<compile_context>
chip_gen: v7x
topology: tpu7x:2x2x1
jax: 0.10.0
libtpu: 0.0.40
codegen_flags: <defaults>
</compile_context>

<pallas_src>
import functools

import jax
import jax.numpy as jnp
from jax import lax
from jax.experimental import pallas as pl
from jax.experimental.pallas import tpu as pltpu


def _round_up(x: int, m: int) -> int:
    return ((x + m - 1) // m) * m


def _sublane_multiple(dtype) -> int:
    # 8 rows for 4-byte, 16 for 2-byte (bf16/f16), 32 for 1-byte dtypes.
    return max(8, 32 // jnp.dtype(dtype).itemsize)


# ---------------------------------------------------------------------------
# Kernels
# ---------------------------------------------------------------------------

def _dense_kernel_single_k(x_ref, w_ref, b_ref, o_ref, *, apply_relu):
    # Whole reduction fits in one tile: no scratch, no zero-fill, one write.
    out = jnp.dot(x_ref[...], w_ref[...], preferred_element_type=jnp.float32)
    out = out + b_ref[...].astype(jnp.float32)
    if apply_relu:
        out = jnp.maximum(out, 0.0)
    o_ref[...] = out.astype(o_ref.dtype)


def _dense_kernel_multi_k(x_ref, w_ref, b_ref, o_ref, acc_ref, *, apply_relu):
    # x_ref: (tm, tk)   w_ref: (tk, tn)   b_ref: (1, tn)
    # o_ref: (tm, tn) resident across K   acc_ref: (tm, tn) f32 scratch
    k = pl.program_id(2)

    @pl.when(k == 0)
    def _():
        # Fold the bias into the accumulator init (saves one VPU add pass).
        acc_ref[...] = jnp.broadcast_to(
            b_ref[...].astype(jnp.float32), acc_ref.shape)

    acc_ref[...] += jnp.dot(x_ref[...], w_ref[...],
                            preferred_element_type=jnp.float32)

    @pl.when(k == pl.num_programs(2) - 1)
    def _():
        out = acc_ref[...]
        if apply_relu:
            out = jnp.maximum(out, 0.0)
        o_ref[...] = out.astype(o_ref.dtype)


# ---------------------------------------------------------------------------
# Wrapper
# ---------------------------------------------------------------------------

_VMEM_TILE_BUDGET = 24 << 20       # keeps well inside v7x's 64 MiB physical VMEM


def _footprint_bytes(tm, tn, tk, e_in, e_out, multi_k):
    fp = 2 * (tm * tk + tk * tn) * e_in     # double-buffered x & weight tiles
    fp += 2 * tm * tn * e_out               # double-buffered output tile
    fp += 2 * tn * 4                        # bias tile (tiny)
    if multi_k:
        fp += tm * tn * 4                   # f32 accumulator scratch
    return fp


def dense(x, weight, bias, apply_relu, *, tm=None, tn=None, tk=None,
          compute_dtype=None):
    """Pallas equivalent of PyTorch Dense.forward.

    x:      [B, in_features]
    weight: [out_features, in_features]   (PyTorch nn.Linear convention)
    bias:   [out_features]
    compute_dtype: optionally cast x/weight (e.g. jnp.bfloat16) for MXU peak;
                   accumulation stays float32, output keeps x's dtype.
    """
    B, IN = x.shape
    OUT, IN2 = weight.shape
    assert IN == IN2, (IN, IN2)
    assert bias.shape == (OUT,)

    out_dtype = x.dtype
    if compute_dtype is not None:
        x = x.astype(compute_dtype)
        weight = weight.astype(compute_dtype)
    cdt = jnp.dtype(x.dtype)

    # One-time transpose to [IN, OUT]: MXU-natural contraction, lane-dense in N.
    w_t = weight.T

    # --- tile selection -----------------------------------------------------
    if cdt.itemsize <= 2:                       # bf16 / fp16 / int8 path
        tm_d, tn_d, tk_d = 1024, 1024, 1024
    else:                                       # f32 path
        tm_d, tn_d, tk_d = 512, 512, 512
    tm = tm if tm is not None else tm_d
    tn = tn if tn is not None else tn_d
    tk = tk if tk is not None else tk_d

    sub = _sublane_multiple(cdt)                # 8 f32 / 16 bf16 / 32 int8
    tm = max(sub, min(_round_up(tm, sub), _round_up(B, sub)))
    tn = max(128, min(_round_up(tn, 128), _round_up(OUT, 128)))

    # Small-batch: make sure the N grid has >= 2 blocks so both v7x cores work.
    if pl.cdiv(B, tm) == 1 and pl.cdiv(OUT, tn) == 1 and OUT > 128:
        tn = max(128, _round_up(pl.cdiv(OUT, 2), 128))

    single_k = IN <= tk
    if single_k:
        tk = IN                                 # full K dim in one tile, no pad
    else:
        tk = max(128, _round_up(tk, 128))

    # Shrink M/N tiles if a caller-supplied config would blow the VMEM budget.
    e_in = cdt.itemsize
    e_out = jnp.dtype(out_dtype).itemsize
    while _footprint_bytes(tm, tn, tk, e_in, e_out, not single_k) > _VMEM_TILE_BUDGET:
        if tn >= tm and tn > 128:
            tn = max(128, _round_up(tn // 2, 128))
        elif tm > sub:
            tm = max(sub, _round_up(tm // 2, sub))
        else:
            break

    grid_m = pl.cdiv(B, tm)
    grid_n = pl.cdiv(OUT, tn)

    # --- K padding (only axis that must be exact zeros) ----------------------
    if single_k:
        grid_k = 1
    else:
        grid_k = pl.cdiv(IN, tk)
        INp = grid_k * tk
        if INp != IN:
            x = jnp.pad(x, ((0, 0), (0, INp - IN)))
            w_t = jnp.pad(w_t, ((0, INp - IN), (0, 0)))

    bias2d = bias.reshape(1, OUT)

    # --- cost estimate: account for re-reads of x and weight ----------------
    cost = pl.CostEstimate(
        flops=2 * B * IN * OUT,
        transcendentals=0,
        bytes_accessed=int(B * IN * e_in * grid_n
                           + IN * OUT * e_in * grid_m
                           + OUT * jnp.dtype(bias.dtype).itemsize
                           + B * OUT * e_out),
    )

    fp = _footprint_bytes(tm, tn, tk, e_in, e_out, not single_k)
    vmem_limit = int(min(max(fp + (8 << 20), 32 << 20), 48 << 20))

    if single_k:
        out = pl.pallas_call(
            functools.partial(_dense_kernel_single_k,
                              apply_relu=bool(apply_relu)),
            out_shape=jax.ShapeDtypeStruct((B, OUT), out_dtype),
            grid_spec=pl.GridSpec(
                grid=(grid_m, grid_n),
                in_specs=[
                    pl.BlockSpec((tm, tk), lambda i, j: (i, 0)),   # x
                    pl.BlockSpec((tk, tn), lambda i, j: (0, j)),   # weight.T
                    pl.BlockSpec((1, tn), lambda i, j: (0, j)),    # bias
                ],
                out_specs=pl.BlockSpec((tm, tn), lambda i, j: (i, j)),
            ),
            compiler_params=pltpu.CompilerParams(
                dimension_semantics=("parallel", "parallel"),
                vmem_limit_bytes=vmem_limit,
            ),
            cost_estimate=cost,
        )(x, w_t, bias2d)
    else:
        out = pl.pallas_call(
            functools.partial(_dense_kernel_multi_k,
                              apply_relu=bool(apply_relu)),
            out_shape=jax.ShapeDtypeStruct((B, OUT), out_dtype),
            grid_spec=pl.GridSpec(
                grid=(grid_m, grid_n, grid_k),
                in_specs=[
                    pl.BlockSpec((tm, tk), lambda i, j, k: (i, k)),   # x
                    pl.BlockSpec((tk, tn), lambda i, j, k: (k, j)),   # weight.T
                    pl.BlockSpec((1, tn), lambda i, j, k: (0, j)),    # bias
                ],
                out_specs=pl.BlockSpec((tm, tn), lambda i, j, k: (i, j)),
                scratch_shapes=[pltpu.VMEM((tm, tn), jnp.float32)],
            ),
            compiler_params=pltpu.CompilerParams(
                dimension_semantics=("parallel", "parallel", "arbitrary"),
                vmem_limit_bytes=vmem_limit,
            ),
            cost_estimate=cost,
        )(x, w_t, bias2d)

    return out


def _reference(x, weight, bias, apply_relu):
    ref = jnp.dot(x, weight.T, precision=lax.Precision.HIGHEST) + bias
    if apply_relu:
        ref = jnp.maximum(ref, 0.0)
    return ref


if __name__ == "__main__":
    key = jax.random.PRNGKey(0)

    def make(key, batch, in_features, out_features):
        k_x, k_w, k_b = jax.random.split(key, 3)
        bound = 1.0 / jnp.sqrt(in_features)
        x = jax.random.normal(k_x, (batch, in_features), dtype=jnp.float32)
        w = jax.random.uniform(k_w, (out_features, in_features),
                               minval=-bound, maxval=bound, dtype=jnp.float32)
        b = jax.random.uniform(k_b, (out_features,),
                               minval=-bound, maxval=bound, dtype=jnp.float32)
        return x, w, b

    k1, k2, k3 = jax.random.split(key, 3)

    # Case 1: small layer matching the module spec (B=8, in=32, out=64), ReLU.
    # Exercises the single-K fast path + ragged N edge block (64 < 128 lanes).
    x, w, b = make(k1, 8, 32, 64)
    out = jax.block_until_ready(dense(x, w, b, apply_relu=True))
    ref = _reference(x, w, b, apply_relu=True)
    assert out.shape == (8, 64)
    assert jnp.allclose(out, ref, atol=1e-4, rtol=1e-4)

    # Case 2: multi-step (M, N, K) grid with forced small tiles:
    # grid = (2, 2, 3), K zero-padded 300->384, ragged N edge (200 vs 2*128),
    # bias folded into the k==0 accumulator init.
    x2, w2, b2 = make(k2, 16, 300, 200)
    out2 = jax.block_until_ready(
        dense(x2, w2, b2, apply_relu=False, tm=8, tn=128, tk=128))
    ref2 = _reference(x2, w2, b2, apply_relu=False)
    assert out2.shape == (16, 200)
    assert jnp.allclose(out2, ref2, atol=5e-4, rtol=5e-4)

    # Case 3: bf16 compute path (f32 accumulation, f32 output); tm is clamped
    # to the 16-row bf16 sublane multiple.
    x3, w3, b3 = make(k3, 8, 32, 64)
    out3 = jax.block_until_ready(
        dense(x3, w3, b3, apply_relu=True, compute_dtype=jnp.bfloat16))
    ref3 = _reference(x3, w3, b3, apply_relu=True)
    assert out3.shape == (8, 64)
    assert jnp.allclose(out3, ref3, atol=5e-2, rtol=5e-2)

    print("KERNEL_OK")
</pallas_src>

<mosaic_0001>
module attributes {stable_mosaic.version = 11 : i64} {
  func.func @_dense_kernel_single_k(%arg0: i32, %arg1: i32, %arg2: memref<8x32xf32, #tpu.memory_space<vmem>>, %arg3: memref<32x128xf32, #tpu.memory_space<vmem>>, %arg4: memref<1x128xf32, #tpu.memory_space<vmem>>, %arg5: memref<8x128xf32, #tpu.memory_space<vmem>>) attributes {dimension_semantics = [#tpu.dimension_semantics<parallel>, #tpu.dimension_semantics<parallel>], iteration_bounds = array<i64: 1, 1>, scalar_prefetch = 0 : i64, scratch_operands = 0 : i64, tpu.core_type = #tpu.core_type<tc>, window_params = [{transform_indices = @transform_0, window_bounds = array<i64: 8, 32>}, {transform_indices = @transform_1, window_bounds = array<i64: 32, 128>}, {transform_indices = @transform_2, window_bounds = array<i64: 1, 128>}, {transform_indices = @transform_3, window_bounds = array<i64: 8, 128>}]} {
    %c0 = arith.constant 0 : index
    %c0_0 = arith.constant 0 : index
    %0 = vector.load %arg2[%c0, %c0_0] : memref<8x32xf32, #tpu.memory_space<vmem>>, vector<8x32xf32>
    %c0_1 = arith.constant 0 : index
    %c0_2 = arith.constant 0 : index
    %1 = vector.load %arg3[%c0_1, %c0_2] : memref<32x128xf32, #tpu.memory_space<vmem>>, vector<32x128xf32>
    %cst = arith.constant dense<0.000000e+00> : vector<8x128xf32>
    %2 = tpu.matmul %0, %1, %cst {dimension_numbers = #tpu.dot_dimension_numbers<[1], [0], [0], [1], [0, 0, 1, 1], [], []>} : vector<8x32xf32>, vector<32x128xf32>, vector<8x128xf32> -> vector<8x128xf32>
    %c0_3 = arith.constant 0 : index
    %c0_4 = arith.constant 0 : index
    %3 = vector.load %arg4[%c0_3, %c0_4] : memref<1x128xf32, #tpu.memory_space<vmem>>, vector<1x128xf32>
    %4 = vector.broadcast %3 : vector<1x128xf32> to vector<8x128xf32>
    %5 = arith.addf %2, %4 : vector<8x128xf32>
    %cst_5 = arith.constant 0.000000e+00 : f32
    %6 = vector.broadcast %cst_5 : f32 to vector<8x128xf32>
    %7 = arith.maximumf %5, %6 : vector<8x128xf32>
    %c0_6 = arith.constant 0 : index
    %c0_7 = arith.constant 0 : index
    %8 = vector.load %arg5[%c0_6, %c0_7] : memref<8x128xf32, #tpu.memory_space<vmem>>, vector<8x128xf32>
    tpu.vector_store %arg5[%c0_6, %c0_7], %7 {strides = array<i32>} : memref<8x128xf32, #tpu.memory_space<vmem>>, vector<8x128xf32>,
    return
  }
  func.func @transform_0(%arg0: i32, %arg1: i32) -> (i32, i32) {
    %c0_i32 = arith.constant 0 : i32
    %c0_i32_0 = arith.constant 0 : i32
    return %arg0, %c0_i32 : i32, i32
  }
  func.func @transform_1(%arg0: i32, %arg1: i32) -> (i32, i32) {
    %c0_i32 = arith.constant 0 : i32
    %c0_i32_0 = arith.constant 0 : i32
    return %c0_i32, %arg1 : i32, i32
  }
  func.func @transform_2(%arg0: i32, %arg1: i32) -> (i32, i32) {
    %c0_i32 = arith.constant 0 : i32
    %c0_i32_0 = arith.constant 0 : i32
    return %c0_i32, %arg1 : i32, i32
  }
  func.func @transform_3(%arg0: i32, %arg1: i32) -> (i32, i32) {
    %c0_i32 = arith.constant 0 : i32
    return %arg0, %arg1 : i32, i32
  }
}

</mosaic_0001>

<llo_original>
// kernel: tpu_custom_call.1
$region0: #{tpu_custom_call.1}
  #allocation0 [shape = 'u32[]', space=smem, size = 0x4, offset = 0x4, fixed_abs, tag = 'smem constant byte address 0x4 - core index']
  #allocation1 [shape = 'u32[144,128]{1,0:T(1,128)}', space=vmem, size = 0x12000, scoped, tag = 'internal scratch']
  %s0 = inlined_call_operand.hbm [shape: f32[8,32], index: 0, kind: input, shape index: {}]
  %s1 = inlined_call_operand.hbm [shape: f32[32,64], index: 1, kind: input, shape index: {}]
  %s2 = inlined_call_operand.vmem [shape: f32[1,64], index: 2, kind: input, shape index: {}]
  %s3 = inlined_call_operand.hbm [shape: f32[8,64], index: 3, kind: output, shape index: {}]
  %s4 = sld [smem:[#allocation0]]
  $region30: #{tpu_custom_call.1} parent=0
    _
  %s6 = ssub.s32 1, %s4
  %s7 = scalar_select 0, %s6, %s4
  $region1: #{tpu_custom_call.1} parent=0
    #allocation2 [shape = 'u8[4096]{0}', space=vmem, size = 0x1000, scoped, tag = 'input window, operand 0, single buffered']
    #allocation3 [shape = 's32[1]{0}', space=sflag, size = 0x4, scoped, tag = 'scoped memory for tpu_custom_call.1']
    #allocation4 [shape = 's32[1]{0}', space=sflag, size = 0x4, scoped, tag = 'scoped memory for tpu_custom_call.1']
    #allocation5 [shape = 'u8[16384]{0}', space=vmem, size = 0x4000, scoped, tag = 'input window, operand 1, single buffered']
    #allocation6 [shape = 's32[1]{0}', space=sflag, size = 0x4, scoped, tag = 'scoped memory for tpu_custom_call.1']
    #allocation7 [shape = 'u8[4096]{0}', space=vmem, size = 0x1000, scoped, tag = 'output window, operand 0, single buffered']
    %8 = vsyncpa [#allocation3], 0
    %9 = vsyncpa [#allocation6], 0
    %10 = vsyncpa [#allocation4], 0
    // Predicated region
    $region2: #{tpu_custom_call.1} parent=1 // pred_check
      _
    $region3: #{tpu_custom_call.1} parent=1 // pred_check_branch
      %12 = sbr.rel (0) target = $region5
    $region4: #{tpu_custom_call.1} parent=1 // pred_region
      %s14 = ssub.s32 128, 128
      %15 = vsyncadd [#allocation3], %s14
      %s17 = sshll.u32 [#allocation2], 4
      %s18 = int_to_ptr.vmem [resolvable:$true] %s17
      %20 = dma.hbm_to_vmem [thread:$0]  %s0, 128, %s18, [#allocation3]
    $region5: #{tpu_custom_call.1} parent=1 // pred_fallthru
      _
    // Predicated region
    $region6: #{tpu_custom_call.1} parent=1 // pred_check
      _
    $region7: #{tpu_custom_call.1} parent=1 // pred_check_branch
      %22 = sbr.rel (0) target = $region9
    $region8: #{tpu_custom_call.1} parent=1 // pred_region
      %s24 = ssub.s32 512, 512
      %25 = vsyncadd [#allocation6], %s24
      %s26 = sshll.u32 [#allocation5], 4
      %s27 = int_to_ptr.vmem [resolvable:$true] %s26
      %32 = dma.hbm_to_vmem [thread:$0]  %s1, 512, %s27, [#allocation6], 128, 128, 8
    $region9: #{tpu_custom_call.1} parent=1 // pred_fallthru
      _
    // Predicated region
    $region10: #{tpu_custom_call.1} parent=1 // pred_check
      _
    $region11: #{tpu_custom_call.1} parent=1 // pred_check_branch
      %34 = sbr.rel (0) target = $region13
    $region12: #{tpu_custom_call.1} parent=1 // pred_region
      _
    $region13: #{tpu_custom_call.1} parent=1 // pred_fallthru
      _
    // Predicated region
    $region14: #{tpu_custom_call.1} parent=1 // pred_check
      _
    $region15: #{tpu_custom_call.1} parent=1 // pred_check_branch
      %36 = sbr.rel (0) target = $region17
    $region16: #{tpu_custom_call.1} parent=1 // pred_region
      %37 = dma.done [#allocation3], 128
    $region17: #{tpu_custom_call.1} parent=1 // pred_fallthru
      _
    // Predicated region
    $region18: #{tpu_custom_call.1} parent=1 // pred_check
      _
    $region19: #{tpu_custom_call.1} parent=1 // pred_check_branch
      %39 = sbr.rel (0) target = $region21
    $region20: #{tpu_custom_call.1} parent=1 // pred_region
      %40 = dma.done [#allocation6], 512
    $region21: #{tpu_custom_call.1} parent=1 // pred_fallthru
      _
    %v41 = vld [vmem:[#allocation2] sm:$0xff]
    %v42 = vld [vmem:[#allocation5] sm:$0xff]
    %v43 = vld [vmem:[#allocation5 + $0x8] sm:$0xff]
    %v44 = vld [vmem:[#allocation5 + $0x10] sm:$0xff]
    %v45 = vld [vmem:[#allocation5 + $0x18] sm:$0xff]
    %v46 = vld [vmem:[%s2] sm:$0x1]
    %v48 = vlaneseq
    %v49 = vshrl.u32 %v48, 7
    %v50 = vsub.s32 0, %v49
    %v51 = vrot.slane %v46, %v50
    %vm53 = vcmask 261120
    %v55 = vsel %vm53, %v41, 0
    %57 = vmatprep.subr.mxu0 0.0
    %58 = vmatpush1.msra.mxu0 %v42
    %59 = vmatprep.subr.mxu0 0.0
    %60 = vmatpush1.msra.mxu0 %v43
    %61 = vmatprep.subr.mxu0 0.0
    %62 = vmatpush1.msra.mxu0 %v44
    %63 = vmatprep.subr.mxu0 0.0
    %64 = vmatpush1.msra.mxu0 %v45
    %65 = vmatprep.subr.mxu0 0.0
    %66 = vmatpush1.msra.mxu0 0.0
    %67 = vmatprep.subr.mxu0 0.0
    %68 = vmatpush1.msra.mxu0 0.0
    %69 = vmatprep.subr.mxu0 0.0
    %70 = vmatpush1.msra.mxu0 0.0
    %71 = vmatprep.subr.mxu0 0.0
    %72 = vmatpush1.msra.mxu0 0.0
    %73 = vmatprep.subr.mxu0 0.0
    %74 = vmatpush1.msra.mxu0 0.0
    %75 = vmatprep.subr.mxu0 0.0
    %76 = vmatpush1.msra.mxu0 0.0
    %77 = vmatprep.subr.mxu0 0.0
    %78 = vmatpush1.msra.mxu0 0.0
    %79 = vmatprep.subr.mxu0 0.0
    %80 = vmatpush1.msra.mxu0 0.0
    %81 = vmatprep.subr.mxu0 0.0
    %82 = vmatpush1.msra.mxu0 0.0
    %83 = vmatprep.subr.mxu0 0.0
    %84 = vmatpush1.msra.mxu0 0.0
    %85 = vmatprep.subr.mxu0 0.0
    %86 = vmatpush1.msra.mxu0 0.0
    %87 = vmatprep.subr.mxu0 0.0
    %88 = vmatpush1.msra.mxu0 0.0
    %89 = vmatprep.subr.mxu0 0.0
    %90 = vmatpush1.msra.mxu0 0.0
    %91 = vmatprep.subr.mxu0 0.0
    %92 = vmatpush1.msra.mxu0 0.0
    %93 = vmatprep.subr.mxu0 0.0
    %94 = vmatpush1.msra.mxu0 0.0
    %95 = vmatprep.subr.mxu0 0.0
    %96 = vmatpush1.msra.mxu0 0.0
    %97 = vmatprep.subr.mxu0 0.0
    %98 = vmatpush1.msra.mxu0 0.0
    %99 = vmatprep.subr.mxu0 0.0
    %100 = vmatpush1.msra.mxu0 0.0
    %101 = vmatprep.subr.mxu0 0.0
    %102 = vmatpush1.msra.mxu0 0.0
    %103 = vmatprep.subr.mxu0 0.0
    %104 = vmatpush1.msra.mxu0 0.0
    %105 = vmatprep.subr.mxu0 0.0
    %106 = vmatpush1.msra.mxu0 0.0
    %107 = vmatprep.subr.mxu0 0.0
    %108 = vmatpush1.msra.mxu0 0.0
    %109 = vmatprep.subr.mxu0 0.0
    %110 = vmatpush1.msra.mxu0 0.0
    %111 = vmatprep.subr.mxu0 0.0
    %112 = vmatpush1.msra.mxu0 0.0
    %113 = vmatprep.subr.mxu0 0.0
    %114 = vmatpush1.msra.mxu0 0.0
    %115 = vmatprep.subr.mxu0 0.0
    %116 = vmatpush1.msra.mxu0 0.0
    %117 = vmatprep.subr.mxu0 0.0
    %118 = vmatpush1.msra.mxu0 0.0
    %119 = vmatprep.subr.mxu0 0.0
    %120 = vmatpush1.msra.mxu0 0.0
    %121 = vmatprep.mubr.f32.mxu0 0.0
    %122 = vmatmul.mubr.f32.gmra.mrb[0].mxu0 %v55
    %v123 = vpop.f32.mrb[0].mxu0
    %v124 = vadd.f32 %v51, %v123
    %v125 = vpop.f32.mrb[0].mxu0
    %126 = vdwg.mxu0
    %v127 = vmax.f32 %v124, 0.0
    %128 = vst [vmem:[#allocation7] sm:$0xff] %v127
    // Predicated region
    $region22: #{tpu_custom_call.1} parent=1 // pred_check
      _
    $region23: #{tpu_custom_call.1} parent=1 // pred_check_branch
      %130 = sbr.rel (0) target = $region25
    $region24: #{tpu_custom_call.1} parent=1 // pred_region
      %s132 = ssub.s32 128, 128
      %133 = vsyncadd [#allocation4], %s132
      %s135 = sshll.u32 [#allocation7], 4
      %s136 = int_to_ptr.vmem [resolvable:$true] %s135
      %138 = dma.vmem_to_hbm [thread:$0]  %s136, 128, %s3, [#allocation4]
    $region25: #{tpu_custom_call.1} parent=1 // pred_fallthru
      _
    // Predicated region
    $region26: #{tpu_custom_call.1} parent=1 // pred_check
      _
    $region27: #{tpu_custom_call.1} parent=1 // pred_check_branch
      %140 = sbr.rel (0) target = $region29
    $region28: #{tpu_custom_call.1} parent=1 // pred_region
      %141 = dma.done [#allocation4], 128
    $region29: #{tpu_custom_call.1} parent=1 // pred_fallthru
      _
    %142 = vsyncpa [#allocation3], 1
    %143 = vsyncpa [#allocation6], 1
    %144 = vsyncpa [#allocation4], 1

</llo_original>
